<compile_context>
chip_gen: v5e
topology: v5e:2x2
jax: 0.10.0
libtpu: 0.0.40
codegen_flags: <defaults>
</compile_context>

<pallas_src>
import functools
import numpy as np
import jax
import jax.numpy as jnp
from jax.experimental import pallas as pl
from jax.experimental.pallas import tpu as pltpu


# ----------------------------------------------------------------------------
# Frequency-mode selection (mirrors PyTorch get_frequency_modes)
# ----------------------------------------------------------------------------
def get_frequency_modes(seq_len, modes=64, mode_select_method='random'):
    modes = min(modes, seq_len // 2)
    if mode_select_method == 'random':
        index = list(range(0, seq_len // 2))
        np.random.shuffle(index)
        index = index[:modes]
    else:
        index = list(range(0, modes))
    index.sort()
    return index


# ----------------------------------------------------------------------------
# Pallas kernel: blocked per-mode complex linear transform
#   x_ref : (mb, 2*B, Din)     bf16   rows  = [x_re ; x_im] per mode
#   w_ref : (mb, Din, 2*Dout)  bf16   lanes = [w_re | w_im] per mode
#   o_ref : (mb, B*2*Dout) or (mb, B, 2*Dout)  f32
#           lanes [:Dout] = Re(out), lanes [Dout:] = Im(out)
# ----------------------------------------------------------------------------
def _fourier_mode_kernel(x_ref, w_ref, o_ref, *, B, Dout, flat_out):
    # One MXU matmul per mode: (2B, Din) @ (Din, 2*Dout), f32 accumulation.
    y = jnp.einsum('mbk,mkn->mbn', x_ref[...], w_ref[...],
                   preferred_element_type=jnp.float32)        # (mb, 2B, 2Dout)
    top = y[:, :B, :]                                         # [xr@wr | xr@wi]
    bot = y[:, B:, :]                                         # [xi@wr | xi@wi]
    out_re = top[:, :, :Dout] - bot[:, :, Dout:]              # xr@wr - xi@wi
    out_im = top[:, :, Dout:] + bot[:, :, :Dout]              # xr@wi + xi@wr
    out = jnp.concatenate([out_re, out_im], axis=-1)          # (mb, B, 2Dout)
    if flat_out:
        o_ref[...] = out.reshape(o_ref.shape)                 # lane-dense store
    else:
        o_ref[...] = out


# ----------------------------------------------------------------------------
# VMEM sizing helpers (account for Mosaic tile padding + in-kernel temporaries)
# ----------------------------------------------------------------------------
def _ceil_to(x, m):
    return -(-x // m) * m


def _tile_padded_bytes(shape, itemsize):
    """VMEM footprint of a block after (sublane, lane) tile padding."""
    dims = list(shape)
    sublane = 8 * (4 // itemsize)        # f32 -> 8, bf16 -> 16
    dims[-1] = _ceil_to(dims[-1], 128)
    if len(dims) >= 2:
        dims[-2] = _ceil_to(dims[-2], sublane)
    n = 1
    for d in dims:
        n *= d
    return n * itemsize


def _block_vmem_bytes(mb, B, Din, Dout):
    x_b = _tile_padded_bytes((mb, 2 * B, Din), 2)            # bf16 input block
    w_b = _tile_padded_bytes((mb, Din, 2 * Dout), 2)         # bf16 weight block
    o_b = _tile_padded_bytes((mb, B, 2 * Dout), 4)           # f32 output block
    # In-kernel f32 temporaries: full matmul result + recombination buffers.
    tmp = (_tile_padded_bytes((mb, 2 * B, 2 * Dout), 4)
           + 3 * _tile_padded_bytes((mb, B, 2 * Dout), 4))
    # Pipelined in/out streams are double-buffered.
    return 2 * (x_b + w_b + o_b) + tmp


def _choose_blocking(M, B, Din, Dout):
    """Pick modes-per-block (a divisor of M -> no padding), VMEM limit."""
    kind = ""
    try:
        kind = jax.devices()[0].device_kind.lower()
    except Exception:
        pass
    single_tc = ("v5" in kind) or ("v6" in kind)
    if single_tc:
        # 128 MiB physical VMEM, one TensorCore: biggest block that fits,
        # no artificial grid split (each grid step costs ~0.35us overhead).
        budget, vmem_limit, min_blocks = 24 << 20, 64 << 20, 1
    else:
        # v7x (64 MiB VMEM shared by 2 TCs) or unknown chip: conservative block
        # size and >= 2 balanced mode-blocks so both TensorCores get work.
        budget, vmem_limit, min_blocks = 8 << 20, 48 << 20, 2

    divisors = [d for d in range(M, 0, -1) if M % d == 0]

    def pick(require_even_grid):
        for d in divisors:
            g = M // d
            if M >= min_blocks and g < min_blocks:
                continue
            if require_even_grid and g % 2 != 0:
                continue
            if _block_vmem_bytes(d, B, Din, Dout) <= budget:
                return d
        return None

    mb = None
    if not single_tc:
        mb = pick(require_even_grid=True)      # balanced split across 2 TCs
    if mb is None:
        mb = pick(require_even_grid=False)
    if mb is None:
        mb = 1
    return mb, vmem_limit


# ----------------------------------------------------------------------------
# Pallas call wrapper
# ----------------------------------------------------------------------------
def _mode_complex_matmul(x_packed, w_packed, B, Dout):
    """x_packed: (M, 2B, Din) bf16; w_packed: (M, Din, 2*Dout) bf16
       returns (M, B, 2*Dout) f32 with lanes [:Dout]=Re, [Dout:]=Im."""
    M, twoB, Din = x_packed.shape
    mb, vmem_limit = _choose_blocking(M, B, Din, Dout)
    grid_m = M // mb

    def run(flat_out):
        if flat_out:
            out_shape = jax.ShapeDtypeStruct((M, B * 2 * Dout), jnp.float32)
            o_spec = pl.BlockSpec((mb, B * 2 * Dout), lambda m: (m, 0))
        else:
            out_shape = jax.ShapeDtypeStruct((M, B, 2 * Dout), jnp.float32)
            o_spec = pl.BlockSpec((mb, B, 2 * Dout), lambda m: (m, 0, 0))
        kernel = functools.partial(_fourier_mode_kernel, B=B, Dout=Dout,
                                   flat_out=flat_out)
        return pl.pallas_call(
            kernel,
            out_shape=out_shape,
            grid_spec=pltpu.PrefetchScalarGridSpec(
                num_scalar_prefetch=0,
                grid=(grid_m,),
                in_specs=[
                    pl.BlockSpec((mb, twoB, Din), lambda m: (m, 0, 0)),
                    pl.BlockSpec((mb, Din, 2 * Dout), lambda m: (m, 0, 0)),
                ],
                out_specs=o_spec,
            ),
            compiler_params=pltpu.CompilerParams(
                dimension_semantics=("parallel",),
                vmem_limit_bytes=vmem_limit,
            ),
        )(x_packed, w_packed)

    # Lane-dense flattened output (biggest measured store-side lever) is only
    # legal when the second-to-last block dim spans M or is a multiple of 8,
    # and only useful when the trailing dim would otherwise be < 128 lanes.
    flat_eligible = ((mb == M or mb % 8 == 0) and (2 * Dout) % 128 != 0)
    if flat_eligible:
        try:
            return run(True).reshape(M, B, 2 * Dout)
        except Exception:
            pass  # fall back to the plain 3-D output layout
    return run(False)


# ----------------------------------------------------------------------------
# Weight packing (do ONCE at init, not per forward)
# ----------------------------------------------------------------------------
def prepare_fourier_weights(weights_re, weights_im):
    """(Din, Dout, M) re/im f32 -> (M, Din, 2*Dout) bf16 with lanes [w_re|w_im]."""
    w = jnp.concatenate([weights_re, weights_im], axis=1)     # (Din, 2*Dout, M)
    return jnp.transpose(w, (2, 0, 1)).astype(jnp.bfloat16)   # (M, Din, 2*Dout)


# ----------------------------------------------------------------------------
# FourierBlock forward (JAX wrapper around the Pallas hot path)
# ----------------------------------------------------------------------------
def fourier_block_forward(q, w_packed, index):
    """
    q        : (B, L, Din) float32
    w_packed : (M, Din, 2*Dout) bf16 from prepare_fourier_weights
    index    : python list of selected frequency indices (len M)
    returns  : (B, Dout, L) float32   (NOT permuted back, matches PyTorch)
    """
    B, L, Din = q.shape
    M, _, twoDout = w_packed.shape
    Dout = twoDout // 2
    F = L // 2 + 1

    x = jnp.transpose(q, (0, 2, 1))                        # (B, Din, L)
    # TODO(synk): FFT / iFFT have no Pallas TPU primitive; done with jnp.fft.
    x_ft = jnp.fft.rfft(x, axis=-1)                        # (B, Din, F) c64

    idx = jnp.asarray(index, dtype=jnp.int32)
    x_sel = jnp.take(x_ft, idx, axis=2)                    # (B, Din, M) c64
    xr = jnp.transpose(jnp.real(x_sel), (2, 0, 1))         # (M, B, Din)
    xi = jnp.transpose(jnp.imag(x_sel), (2, 0, 1))         # (M, B, Din)
    # Fold re/im into the sublane (row) axis: one bf16 DMA stream, 2B rows/mode.
    x_packed = jnp.concatenate([xr, xi], axis=1).astype(jnp.bfloat16)  # (M,2B,Din)

    y = _mode_complex_matmul(x_packed, w_packed, B, Dout)  # (M, B, 2*Dout) f32
    out_sel = (y[..., :Dout] + 1j * y[..., Dout:]).astype(jnp.complex64)  # (M,B,Dout)
    out_sel = jnp.transpose(out_sel, (1, 2, 0))            # (B, Dout, M)

    # PyTorch writes out_ft[:, :, wi] for wi = 0..M-1 (consecutive slots, NOT
    # the selected frequency indices) and leaves the rest zero -- this mirrors
    # that FEDformer quirk intentionally.
    out_ft = jnp.zeros((B, Dout, F), dtype=jnp.complex64)
    out_ft = out_ft.at[:, :, :M].set(out_sel)
    return jnp.fft.irfft(out_ft, n=L, axis=-1)             # (B, Dout, L) f32


# ----------------------------------------------------------------------------
# Pure-JAX reference (f32 complex, per-mode loop) for validation
# ----------------------------------------------------------------------------
def _reference_forward(q, weights_re, weights_im, index):
    B, L, D = q.shape
    Dout = weights_re.shape[1]
    x = jnp.transpose(q, (0, 2, 1))
    x_ft = jnp.fft.rfft(x, axis=-1)
    w = (weights_re + 1j * weights_im).astype(jnp.complex64)
    out_ft = jnp.zeros((B, Dout, L // 2 + 1), dtype=jnp.complex64)
    for wi, i in enumerate(index):
        out_ft = out_ft.at[:, :, wi].set(
            jnp.einsum('bh,hi->bi', x_ft[:, :, i], w[:, :, wi]))
    return jnp.fft.irfft(out_ft, n=L, axis=-1)


# ----------------------------------------------------------------------------
# Main
# ----------------------------------------------------------------------------
if __name__ == "__main__":
    # Small shapes consistent with the module.
    B, L, D = 2, 16, 8           # batch, seq_len, channels (in == out)
    in_channels = out_channels = D
    modes = 4
    index = get_frequency_modes(L, modes=modes, mode_select_method='lowest')
    M = len(index)

    scale = 1.0 / (in_channels * out_channels)
    key = jax.random.PRNGKey(0)
    kq, kr, ki = jax.random.split(key, 3)
    # nn.Parameter init is scale*(1+0j); use scaled random re/im here so the
    # imaginary weight path is actually exercised and validated.
    weights_re = scale * jax.random.normal(kr, (in_channels, out_channels, M), jnp.float32)
    weights_im = scale * jax.random.normal(ki, (in_channels, out_channels, M), jnp.float32)
    q = jax.random.normal(kq, (B, L, D), dtype=jnp.float32)

    # Pack/cast the weights once (module-init time), not per forward.
    w_packed = prepare_fourier_weights(weights_re, weights_im)

    out = jax.block_until_ready(fourier_block_forward(q, w_packed, index))
    assert out.shape == (B, out_channels, L)
    assert out.dtype == jnp.float32

    ref = jax.block_until_ready(_reference_forward(q, weights_re, weights_im, index))
    err = float(jnp.max(jnp.abs(out - ref)))
    assert err < 5e-2, f"max abs error vs reference: {err}"

    print("KERNEL_OK")
</pallas_src>

<mosaic_0001>
module attributes {stable_mosaic.version = 11 : i64} {
  func.func @_fourier_mode_kernel(%arg0: i32, %arg1: memref<2x4x8xbf16, #tpu.memory_space<vmem>>, %arg2: memref<2x8x16xbf16, #tpu.memory_space<vmem>>, %arg3: memref<2x2x16xf32, #tpu.memory_space<vmem>>) attributes {dimension_semantics = [#tpu.dimension_semantics<parallel>], iteration_bounds = array<i64: 2>, scalar_prefetch = 0 : i64, scratch_operands = 0 : i64, tpu.core_type = #tpu.core_type<tc>, window_params = [{transform_indices = @transform_0, window_bounds = array<i64: 2, 4, 8>}, {transform_indices = @transform_1, window_bounds = array<i64: 2, 8, 16>}, {transform_indices = @transform_2, window_bounds = array<i64: 2, 2, 16>}]} {
    %c0 = arith.constant 0 : index
    %c0_0 = arith.constant 0 : index
    %c0_1 = arith.constant 0 : index
    %0 = vector.load %arg1[%c0, %c0_0, %c0_1] : memref<2x4x8xbf16, #tpu.memory_space<vmem>>, vector<2x4x8xbf16>
    %c0_2 = arith.constant 0 : index
    %c0_3 = arith.constant 0 : index
    %c0_4 = arith.constant 0 : index
    %1 = vector.load %arg2[%c0_2, %c0_3, %c0_4] : memref<2x8x16xbf16, #tpu.memory_space<vmem>>, vector<2x8x16xbf16>
    "tpu.trace_start"() <{level = 10 : i32, message = "mbk,mkn->mbn"}> : () -> ()
    %cst = arith.constant dense<0.000000e+00> : vector<2x4x16xf32>
    %2 = tpu.matmul %0, %1, %cst {dimension_numbers = #tpu.dot_dimension_numbers<[2], [1], [1], [2], [0, 0, 0, 1, 1, 2], [0], [0]>} : vector<2x4x8xbf16>, vector<2x8x16xbf16>, vector<2x4x16xf32> -> vector<2x4x16xf32>
    "tpu.trace_stop"() : () -> ()
    %3 = vector.extract_strided_slice %2 {offsets = [0, 0, 0], sizes = [2, 2, 16], strides = [1, 1, 1]} : vector<2x4x16xf32> to vector<2x2x16xf32>
    %4 = vector.extract_strided_slice %2 {offsets = [0, 2, 0], sizes = [2, 2, 16], strides = [1, 1, 1]} : vector<2x4x16xf32> to vector<2x2x16xf32>
    %5 = vector.extract_strided_slice %3 {offsets = [0, 0, 0], sizes = [2, 2, 8], strides = [1, 1, 1]} : vector<2x2x16xf32> to vector<2x2x8xf32>
    %6 = vector.extract_strided_slice %4 {offsets = [0, 0, 8], sizes = [2, 2, 8], strides = [1, 1, 1]} : vector<2x2x16xf32> to vector<2x2x8xf32>
    %7 = arith.subf %5, %6 : vector<2x2x8xf32>
    %8 = vector.extract_strided_slice %3 {offsets = [0, 0, 8], sizes = [2, 2, 8], strides = [1, 1, 1]} : vector<2x2x16xf32> to vector<2x2x8xf32>
    %9 = vector.extract_strided_slice %4 {offsets = [0, 0, 0], sizes = [2, 2, 8], strides = [1, 1, 1]} : vector<2x2x16xf32> to vector<2x2x8xf32>
    %10 = arith.addf %8, %9 : vector<2x2x8xf32>
    %11 = tpu.concatenate %7, %10 in 2 : vector<2x2x8xf32>, vector<2x2x8xf32> -> vector<2x2x16xf32>
    %c0_5 = arith.constant 0 : index
    %c0_6 = arith.constant 0 : index
    %c0_7 = arith.constant 0 : index
    %12 = vector.load %arg3[%c0_5, %c0_6, %c0_7] : memref<2x2x16xf32, #tpu.memory_space<vmem>>, vector<2x2x16xf32>
    tpu.vector_store %arg3[%c0_5, %c0_6, %c0_7], %11 {strides = array<i32>} : memref<2x2x16xf32, #tpu.memory_space<vmem>>, vector<2x2x16xf32>,
    return
  }
  func.func @transform_0(%arg0: i32) -> (i32, i32, i32) {
    %c0_i32 = arith.constant 0 : i32
    %c0_i32_0 = arith.constant 0 : i32
    %c0_i32_1 = arith.constant 0 : i32
    return %arg0, %c0_i32, %c0_i32_0 : i32, i32, i32
  }
  func.func @transform_1(%arg0: i32) -> (i32, i32, i32) {
    %c0_i32 = arith.constant 0 : i32
    %c0_i32_0 = arith.constant 0 : i32
    %c0_i32_1 = arith.constant 0 : i32
    return %arg0, %c0_i32, %c0_i32_0 : i32, i32, i32
  }
  func.func @transform_2(%arg0: i32) -> (i32, i32, i32) {
    %c0_i32 = arith.constant 0 : i32
    %c0_i32_0 = arith.constant 0 : i32
    %c0_i32_1 = arith.constant 0 : i32
    return %arg0, %c0_i32, %c0_i32_0 : i32, i32, i32
  }
}

</mosaic_0001>

<llo_original>
// kernel: tpu_custom_call.1
$region0: #{tpu_custom_call.1}
  #allocation0 [shape = 'u32[]', space=smem, size = 0x4, offset = 0x4, fixed_abs, tag = 'smem constant byte address 0x4 - core index']
  #allocation1 [shape = 'u32[72,128]{1,0:T(1,128)}', space=vmem, size = 0x9000, scoped, tag = 'internal scratch']
  %s0 = inlined_call_operand.hbm [shape: bf16[4,4,8], index: 0, kind: input, shape index: {}]
  %s1 = inlined_call_operand.hbm [shape: bf16[4,8,16], index: 1, kind: input, shape index: {}]
  %s2 = inlined_call_operand.hbm [shape: f32[4,2,16], index: 2, kind: output, shape index: {}]
  %s3 = sld [smem:[#allocation0]]
  $region49: #{tpu_custom_call.1} parent=0
    _
  %s5 = ssub.s32 1, %s3
  %s6 = scalar_select 0, %s5, %s3
  $region1: #{tpu_custom_call.1} parent=0
    #allocation2 [shape = 'u8[4096]{0}', space=vmem, size = 0x1000, scoped, tag = 'input window, operand 0']
    #allocation3 [shape = 's32[2]{0}', space=sflag, size = 0x8, scoped, tag = 'scoped memory for tpu_custom_call.1']
    #allocation4 [shape = 's32[2]{0}', space=sflag, size = 0x8, scoped, tag = 'scoped memory for tpu_custom_call.1']
    #allocation5 [shape = 'u8[8192]{0}', space=vmem, size = 0x2000, scoped, tag = 'input window, operand 1']
    #allocation6 [shape = 's32[2]{0}', space=sflag, size = 0x8, scoped, tag = 'scoped memory for tpu_custom_call.1']
    #allocation7 [shape = 'u8[4096]{0}', space=vmem, size = 0x1000, scoped, tag = 'output window, operand 0']
    %7 = vsyncpa [#allocation3], 0
    %s8 = scalar_lea.sflag [#allocation3], 1
    %9 = vsyncpa %s8, 0
    %10 = vsyncpa [#allocation6], 0
    %s11 = scalar_lea.sflag [#allocation6], 1
    %12 = vsyncpa %s11, 0
    %13 = vsyncpa [#allocation4], 0
    %s14 = scalar_lea.sflag [#allocation4], 1
    %15 = vsyncpa %s14, 0
    loop: start=0, step=1, limit=4
    $region2: #{tpu_custom_call.1} parent=1 // loop_pre_header
      _
    $region3: #{tpu_custom_call.1} parent=1 // loop_header
      %s17 = sphi 0, %s21
      %p18 = scmp.ge.s32.totalorder %s17, 4
      %s27 = sphi 0, %s29
      %s30 = sphi 0, %s27
      %s31 = sphi 0, %s30
      %s47 = sphi 0, %s31
      %s53 = sphi 0, %s55
      %s56 = sphi 0, %s53
      %s57 = sphi 0, %s56
      %s73 = sphi 0, %s57
      %s79 = sphi 0, %s81
      %s82 = sphi 0, %s79
      %s83 = sphi 0, %s82
      %s99 = sphi 0, %s83
    $region4: #{tpu_custom_call.1} parent=1 // loop_header_branch
      %20 = sbr.rel (%p18) target = $region8
    $region5: #{tpu_custom_call.1} parent=1 // loop_body
      %s22 = ssub.s32 %s17, 1
      %s23 = ssub.s32 %s17, 2
      %s24 = sadd.s32 %s17, 1
      %s25 = ssub.s32 %s17, %s24
      %p26 = scmp.eq.s32.totalorder %s25, 0
      %s28 = sadd.s32 %s27, 1
      %s29 = scalar_select %p26, %s27, %s28
      %p32 = pneg %p26
      %p33 = scmp.eq.s32.totalorder %s17, 1
      %p34 = por %p32, %p33
      %p35 = scmp.ne.s32.totalorder %s27, %s30
      %p36 = scmp.eq.s32.totalorder %s17, 0
      %p37 = por %p35, %p36
      %p38 = scmp.ne.s32.totalorder %s27, %s30
      %p39 = scmp.eq.s32.totalorder %s22, 1
      %p40 = por %p38, %p39
      %p41 = scmp.ne.s32.totalorder %s30, %s31
      %p42 = scmp.eq.s32.totalorder %s22, 0
      %p43 = por %p41, %p42
      %p44 = scmp.ne.s32.totalorder %s30, %s31
      %p45 = scmp.eq.s32.totalorder %s23, 1
      %p46 = por %p44, %p45
      %p48 = scmp.ne.s32.totalorder %s31, %s47
      %p49 = scmp.eq.s32.totalorder %s23, 0
      %p50 = por %p48, %p49
      %s51 = ssub.s32 %s17, %s24
      %p52 = scmp.eq.s32.totalorder %s51, 0
      %s54 = sadd.s32 %s53, 1
      %s55 = scalar_select %p52, %s53, %s54
      %p58 = pneg %p52
      %p59 = scmp.eq.s32.totalorder %s17, 1
      %p60 = por %p58, %p59
      %p61 = scmp.ne.s32.totalorder %s53, %s56
      %p62 = scmp.eq.s32.totalorder %s17, 0
      %p63 = por %p61, %p62
      %p64 = scmp.ne.s32.totalorder %s53, %s56
      %p65 = scmp.eq.s32.totalorder %s22, 1
      %p66 = por %p64, %p65
      %p67 = scmp.ne.s32.totalorder %s56, %s57
      %p68 = scmp.eq.s32.totalorder %s22, 0
      %p69 = por %p67, %p68
      %p70 = scmp.ne.s32.totalorder %s56, %s57
      %p71 = scmp.eq.s32.totalorder %s23, 1
      %p72 = por %p70, %p71
      %p74 = scmp.ne.s32.totalorder %s57, %s73
      %p75 = scmp.eq.s32.totalorder %s23, 0
      %p76 = por %p74, %p75
      %s77 = ssub.s32 %s17, %s24
      %p78 = scmp.eq.s32.totalorder %s77, 0
      %s80 = sadd.s32 %s79, 1
      %s81 = scalar_select %p78, %s79, %s80
      %p84 = pneg %p78
      %p85 = scmp.eq.s32.totalorder %s17, 1
      %p86 = por %p84, %p85
      %p87 = scmp.ne.s32.totalorder %s79, %s82
      %p88 = scmp.eq.s32.totalorder %s17, 0
      %p89 = por %p87, %p88
      %p90 = scmp.ne.s32.totalorder %s79, %s82
      %p91 = scmp.eq.s32.totalorder %s22, 1
      %p92 = por %p90, %p91
      %p93 = scmp.ne.s32.totalorder %s82, %s83
      %p94 = scmp.eq.s32.totalorder %s22, 0
      %p95 = por %p93, %p94
      %p96 = scmp.ne.s32.totalorder %s82, %s83
      %p97 = scmp.eq.s32.totalorder %s23, 1
      %p98 = por %p96, %p97
      %p100 = scmp.ne.s32.totalorder %s83, %s99
      %p101 = scmp.eq.s32.totalorder %s23, 0
      %p102 = por %p100, %p101
      %p103 = scmp.le.s32.totalorder 1, %s17
      %p104 = scmp.lt.s32.totalorder %s17, 3
      %p105 = pnand %p103, %p104
      %p106 = pneg %p105
      // Predicated region
      $region9: #{tpu_custom_call.1} parent=5 // pred_check
        _
      $region10: #{tpu_custom_call.1} parent=5 // pred_check_branch
        %108 = sbr.rel (%p105) target = $region12
      $region11: #{tpu_custom_call.1} parent=5 // pred_region
        %s109 = ssub.s32 %s17, 1
      $region12: #{tpu_custom_call.1} parent=5 // pred_fallthru
        _
      %p110 = scmp.lt.s32.totalorder %s17, 2
      // Predicated region
      $region13: #{tpu_custom_call.1} parent=5 // pred_check
        %p111 = pneg %p110
      $region14: #{tpu_custom_call.1} parent=5 // pred_check_branch
        %113 = sbr.rel (%p111) target = $region16
      $region15: #{tpu_custom_call.1} parent=5 // pred_region
        // Predicated region
        $region17: #{tpu_custom_call.1} parent=15 // pred_check
          %p114 = pneg %p37
        $region18: #{tpu_custom_call.1} parent=15 // pred_check_branch
          %116 = sbr.rel (%p114) target = $region20
        $region19: #{tpu_custom_call.1} parent=15 // pred_region
          %s117 = sand.u32 %s27, 1
          %s118 = scalar_lea.sflag [#allocation3], %s117
          %s119 = sand.u32 %s27, 1
          %s120 = smul.addr %s119, 4
          %s121 = scalar_lea.vmem [#allocation2], %s120
          %s122 = smul.u32 2, %s17
          %124 = vsyncadd %s118, 0
          %s125 = smul.addr %s122, 2
          %s126 = scalar_lea.hbm %s0, %s125
          %s127 = sshll.u32 %s126, 4
          %s128 = int_to_ptr.hbm [resolvable:$true] %s127
          %s129 = sshll.u32 %s121, 4
          %s130 = int_to_ptr.vmem [resolvable:$true] %s129
          %135 = dma.hbm_to_vmem [thread:$0]  %s128, 64, %s130, %s118, 32, 32, 2
        $region20: #{tpu_custom_call.1} parent=15 // pred_fallthru
          _
        // Predicated region
        $region21: #{tpu_custom_call.1} parent=15 // pred_check
          %p136 = pneg %p63
        $region22: #{tpu_custom_call.1} parent=15 // pred_check_branch
          %138 = sbr.rel (%p136) target = $region24
        $region23: #{tpu_custom_call.1} parent=15 // pred_region
          %s139 = sand.u32 %s53, 1
          %s140 = scalar_lea.sflag [#allocation6], %s139
          %s141 = sand.u32 %s53, 1
          %s142 = smul.addr %s141, 8
          %s143 = scalar_lea.vmem [#allocation5], %s142
          %s144 = smul.u32 2, %s17
          %146 = vsyncadd %s140, 0
          %s147 = smul.addr %s144, 4
          %s148 = scalar_lea.hbm %s1, %s147
          %s149 = sshll.u32 %s148, 4
          %s150 = int_to_ptr.hbm [resolvable:$true] %s149
          %s151 = sshll.u32 %s143, 4
          %s152 = int_to_ptr.vmem [resolvable:$true] %s151
          %157 = dma.hbm_to_vmem [thread:$0]  %s150, 128, %s152, %s140, 64, 64, 4
        $region24: #{tpu_custom_call.1} parent=15 // pred_fallthru
          _
      $region16: #{tpu_custom_call.1} parent=5 // pred_fallthru
        _
      %p158 = scmp.le.s32.totalorder 1, %s17
      %p159 = scmp.lt.s32.totalorder %s17, 3
      %p160 = pnand %p158, %p159
      %p161 = pneg %p160
      // Predicated region
      $region25: #{tpu_custom_call.1} parent=5 // pred_check
        _
      $region26: #{tpu_custom_call.1} parent=5 // pred_check_branch
        %163 = sbr.rel (%p160) target = $region28
      $region27: #{tpu_custom_call.1} parent=5 // pred_region
        %s164 = ssub.s32 %s17, 1
        %s165 = sand.u32 %s30, 1
        %s166 = scalar_lea.sflag [#allocation3], %s165
        %s167 = sand.u32 %s30, 1
        %s168 = smul.addr %s167, 4
        %s169 = scalar_lea.vmem [#allocation2], %s168
        // Predicated region
        $region29: #{tpu_custom_call.1} parent=27 // pred_check
          %p170 = pneg %p43
        $region30: #{tpu_custom_call.1} parent=27 // pred_check_branch
          %172 = sbr.rel (%p170) target = $region32
        $region31: #{tpu_custom_call.1} parent=27 // pred_region
          %174 = dma.done %s166, 64
        $region32: #{tpu_custom_call.1} parent=27 // pred_fallthru
          _
        %s175 = sand.u32 %s56, 1
        %s176 = scalar_lea.sflag [#allocation6], %s175
        %s177 = sand.u32 %s56, 1
        %s178 = smul.addr %s177, 8
        %s179 = scalar_lea.vmem [#allocation5], %s178
        // Predicated region
        $region33: #{tpu_custom_call.1} parent=27 // pred_check
          %p180 = pneg %p69
        $region34: #{tpu_custom_call.1} parent=27 // pred_check_branch
          %182 = sbr.rel (%p180) target = $region36
        $region35: #{tpu_custom_call.1} parent=27 // pred_region
          %184 = dma.done %s176, 128
        $region36: #{tpu_custom_call.1} parent=27 // pred_fallthru
          _
        %s185 = sand.u32 %s30, 1
        %s186 = scalar_lea.sflag [#allocation3], %s185
        %s187 = sand.u32 %s30, 1
        %s188 = smul.addr %s187, 4
        %s189 = scalar_lea.vmem [#allocation2], %s188
        %p190 = pneg %p43
        %p191 = pneg %p40
        %s192 = sand.u32 %s56, 1
        %s193 = scalar_lea.sflag [#allocation6], %s192
        %s194 = sand.u32 %s56, 1
        %s195 = smul.addr %s194, 8
        %s196 = scalar_lea.vmem [#allocation5], %s195
        %p197 = pneg %p69
        %p198 = pneg %p66
        %p199 = pneg %p95
        %p200 = pneg %p92
        %s201 = sand.u32 %s82, 1
        %s202 = scalar_lea.sflag [#allocation4], %s201
        %s203 = sand.u32 %s82, 1
        %s204 = smul.addr %s203, 4
        %s205 = scalar_lea.vmem [#allocation7], %s204
        %s206 = smul.u32 2, %s22
        %s207 = smul.u32 2, %s22
        %s208 = smul.u32 2, %s22
        %v210 = vld [vmem:[%s169] sm:$0x3]
        %v211 = vld [vmem:[%s169 + $0x2] sm:$0x3]
        %v212 = vld [vmem:[%s179] sm:$0xf]
        %v213 = vld [vmem:[%s179 + $0x4] sm:$0xf]
        %vm214 = vcmask 64512
        %v216 = vsel %vm214, %v210, 0
        %vm218 = vcmask 1043456
        %v220 = vsel %vm218, %v212, 0
        %222 = vmatpush.bf16.msra.mxu0 0
        %223 = vmatpush.bf16.msra.mxu0 0
        %224 = vmatpush.bf16.msra.mxu0 0
        %225 = vmatpush.bf16.msra.mxu0 0
        %226 = vmatpush.bf16.msra.mxu0 0
        %227 = vmatpush.bf16.msra.mxu0 0
        %228 = vmatpush.bf16.msra.mxu0 0
        %229 = vmatpush.bf16.msra.mxu0 %v220
        %230 = vmatmul.bf16.gmra.mxu0 %v216
        %v231 = vpop.f32.mrf.mxu0
        %v232 = vadd.f32 0.0, %v231
        %v233 = vpop.f32.mrf.mxu0
        %234 = vdwg.mxu0
        %v236 = vsel %vm214, %v211, 0
        %v239 = vsel %vm218, %v213, 0
        %241 = vmatpush.bf16.msra.mxu0 0
        %242 = vmatpush.bf16.msra.mxu0 0
        %243 = vmatpush.bf16.msra.mxu0 0
        %244 = vmatpush.bf16.msra.mxu0 0
        %245 = vmatpush.bf16.msra.mxu0 0
        %246 = vmatpush.bf16.msra.mxu0 0
        %247 = vmatpush.bf16.msra.mxu0 0
        %248 = vmatpush.bf16.msra.mxu0 %v239
        %249 = vmatmul.bf16.gmra.mxu0 %v236
        %v250 = vpop.f32.mrf.mxu0
        %v251 = vadd.f32 0.0, %v250
        %v252 = vpop.f32.mrf.mxu0
        %253 = vdwg.mxu0
        %v256 = vrot.slane %v232, 2
        %v257 = vrot.slane %v251, 2
        %258 = vrot.lane.b32.xlu0 %v256, 120
        %v259 = vpop.permute.xlu0 %258
        %260 = vrot.lane.b32.xlu0 %v257, 120
        %v261 = vpop.permute.xlu0 %260
        %v264 = vsub.f32 %v232, %v259
        %v265 = vsub.f32 %v251, %v261
        %266 = vrot.lane.b32.xlu0 %v256, 8
        %v267 = vpop.permute.xlu0 %266
        %268 = vrot.lane.b32.xlu0 %v257, 8
        %v269 = vpop.permute.xlu0 %268
        %v272 = vadd.f32 %v232, %v267
        %v273 = vadd.f32 %v251, %v269
        %v274 = vsel %vm214, %v264, %v272
        %v275 = vsel %vm214, %v265, %v273
        %vm276 = vcmask 123904
        %277 = vst.msk [vmem:[%s205] sm:$0x3] %vm276, %v274
        %278 = vst.msk [vmem:[%s205 + $0x2] sm:$0x3] %vm276, %v275
        %s279 = sand.u32 %s82, 1
        %s280 = scalar_lea.sflag [#allocation4], %s279
        %s281 = sand.u32 %s82, 1
        %s282 = smul.addr %s281, 4
        %s283 = scalar_lea.vmem [#allocation7], %s282
        // Predicated region
        $region37: #{tpu_custom_call.1} parent=27 // pred_check
          %p284 = pneg %p92
        $region38: #{tpu_custom_call.1} parent=27 // pred_check_branch
          %286 = sbr.rel (%p284) target = $region40
        $region39: #{tpu_custom_call.1} parent=27 // pred_region
          %s287 = smul.u32 2, %s22
          %289 = vsyncadd %s280, 0
          %s290 = smul.addr %s287, 2
          %s291 = scalar_lea.hbm %s2, %s290
          %s292 = sshll.u32 %s283, 4
          %s293 = int_to_ptr.vmem [resolvable:$true] %s292
          %s294 = sshll.u32 %s291, 4
          %s295 = int_to_ptr.hbm [resolvable:$true] %s294
          %300 = dma.vmem_to_hbm [thread:$0]  %s293, 64, %s295, %s280, 32, 32, 2
        $region40: #{tpu_custom_call.1} parent=27 // pred_fallthru
          _
      $region28: #{tpu_custom_call.1} parent=5 // pred_fallthru
        _
      %p301 = scmp.le.s32.totalorder 2, %s17
      // Predicated region
      $region41: #{tpu_custom_call.1} parent=5 // pred_check
        %p302 = pneg %p301
      $region42: #{tpu_custom_call.1} parent=5 // pred_check_branch
        %304 = sbr.rel (%p302) target = $region44
      $region43: #{tpu_custom_call.1} parent=5 // pred_region
        %s305 = ssub.s32 %s17, 2
        // Predicated region
        $region45: #{tpu_custom_call.1} parent=43 // pred_check
          %p306 = pneg %p98
        $region46: #{tpu_custom_call.1} parent=43 // pred_check_branch
          %308 = sbr.rel (%p306) target = $region48
        $region47: #{tpu_custom_call.1} parent=43 // pred_region
          %s309 = sand.u32 %s83, 1
          %s310 = scalar_lea.sflag [#allocation4], %s309
          %s311 = sand.u32 %s83, 1
          %s312 = smul.addr %s311, 4
          %s313 = scalar_lea.vmem [#allocation7], %s312
          %315 = dma.done %s310, 64
        $region48: #{tpu_custom_call.1} parent=43 // pred_fallthru
          _
      $region44: #{tpu_custom_call.1} parent=5 // pred_fallthru
        _
    $region6: #{tpu_custom_call.1} parent=1 // loop_footer
      %s21 = sadd.s32 1, %s17
    $region7: #{tpu_custom_call.1} parent=1 // loop_footer_branch
      %16 = sbr.rel target = $region3
    $region8: #{tpu_custom_call.1} parent=1 // loop_exit
      _
    %316 = vsyncpa [#allocation3], 1
    %s317 = scalar_lea.sflag [#allocation3], 1
    %318 = vsyncpa %s317, 1
    %319 = vsyncpa [#allocation6], 1
    %s320 = scalar_lea.sflag [#allocation6], 1
    %321 = vsyncpa %s320, 1
    %322 = vsyncpa [#allocation4], 1
    %s323 = scalar_lea.sflag [#allocation4], 1
    %324 = vsyncpa %s323, 1

</llo_original>
